<compile_context>
chip_gen: v7x
topology: tpu7x:2x2x1
jax: 0.10.0
libtpu: 0.0.40
codegen_flags: <defaults>
</compile_context>

<pallas_src>
import jax
import jax.numpy as jnp
from jax.experimental import pallas as pl
from jax.experimental.pallas import tpu as pltpu

ACTIONS = ['UP', 'RIGHT', 'DOWN', 'LEFT', 'WAIT', 'BOMB']
N_FEATURES = 22
HIDDEN = 50
HIDDEN_PAD = 128          # zero-padded hidden width -> clean single MXU tile per dot
N_ACTIONS = len(ACTIONS)  # 6
OUT_PAD = 8               # actions zero-padded 6 -> 8 (nice sublane count for the transpose)


def mlp_kernel(x_ref, w1_ref, b1_ref, w2_ref, b2_ref, w3_ref, b3_ref, o_ref):
    # Whole MLP hot path in one kernel: 3 MXU matmuls (bf16 in, f32 acc) + VPU ReLUs/bias adds.
    x = x_ref[...].astype(jnp.bfloat16)          # in-kernel f32->bf16 cast (no wrapper pass)
    h1 = jnp.dot(x, w1_ref[...], preferred_element_type=jnp.float32) + b1_ref[...]
    h1 = jnp.maximum(h1, 0.0)                    # f32 activations (v5e-friendly)
    h2 = jnp.dot(h1.astype(jnp.bfloat16), w2_ref[...],
                 preferred_element_type=jnp.float32) + b2_ref[...]
    h2 = jnp.maximum(h2, 0.0)
    out = jnp.dot(h2.astype(jnp.bfloat16), w3_ref[...],
                  preferred_element_type=jnp.float32) + b3_ref[...]   # (tb, 8) f32
    # Transpose the small (tb, 8) slab -> (8, tb) so the store / writeback is lane-dense.
    o_ref[...] = out.T.astype(o_ref.dtype)


def _round_up(n, m):
    return ((n + m - 1) // m) * m


def _pad_to(a, shape):
    return jnp.pad(a, [(0, t - s) for s, t in zip(a.shape, shape)])


def net_forward(x, params, *, batch_tile=4096):
    """x: (B, 22) float32. params: dict of w1,b1,w2,b2,w3,b3 (weights stored (in, out))."""
    B, _ = x.shape

    # ---- prepare weights once: pad hidden 50->128, actions 6->8, cast matmul inputs to bf16 ----
    w1 = _pad_to(params["w1"], (N_FEATURES, HIDDEN_PAD)).astype(jnp.bfloat16)
    b1 = _pad_to(params["b1"], (1, HIDDEN_PAD))                        # f32
    w2 = _pad_to(params["w2"], (HIDDEN_PAD, HIDDEN_PAD)).astype(jnp.bfloat16)
    b2 = _pad_to(params["b2"], (1, HIDDEN_PAD))                        # f32
    w3 = _pad_to(params["w3"], (HIDDEN_PAD, OUT_PAD)).astype(jnp.bfloat16)
    b3 = _pad_to(params["b3"], (1, OUT_PAD))                           # f32

    # ---- batch tiling ----
    # Tile is a multiple of 128 (lane-dense transposed output block), capped both by
    # batch_tile and by ceil(B/2) so the parallel grid axis has >=2 blocks whenever the
    # batch is big enough (keeps both v7x TensorCores busy; no-op on v5e/v6e).
    tb = min(_round_up(batch_tile, 128), _round_up(pl.cdiv(B, 2), 128))
    n_blocks = pl.cdiv(B, tb)
    Bp = n_blocks * tb
    xp = jnp.pad(x, ((0, Bp - B), (0, 0))) if Bp != B else x           # f32, no wrapper cast

    const2d = lambda a: pl.BlockSpec(a.shape, lambda i: (0, 0))        # weights resident across steps

    flops = 2 * Bp * (N_FEATURES * HIDDEN_PAD + HIDDEN_PAD * HIDDEN_PAD + HIDDEN_PAD * OUT_PAD)
    w_bytes = ((N_FEATURES * HIDDEN_PAD + HIDDEN_PAD * HIDDEN_PAD + HIDDEN_PAD * OUT_PAD) * 2
               + (HIDDEN_PAD + HIDDEN_PAD + OUT_PAD) * 4)
    bytes_accessed = Bp * (N_FEATURES * 4 + OUT_PAD * 4) + w_bytes

    out_t = pl.pallas_call(
        mlp_kernel,
        out_shape=jax.ShapeDtypeStruct((OUT_PAD, Bp), jnp.float32),    # transposed, lane-dense
        grid=(n_blocks,),
        in_specs=[
            pl.BlockSpec((tb, N_FEATURES), lambda i: (i, 0)),          # x tile streams per step (f32)
            const2d(w1), const2d(b1),
            const2d(w2), const2d(b2),
            const2d(w3), const2d(b3),
        ],
        out_specs=pl.BlockSpec((OUT_PAD, tb), lambda i: (0, i)),
        compiler_params=pltpu.CompilerParams(
            dimension_semantics=("parallel",),                         # megacore split on v7x
            vmem_limit_bytes=48 * 1024 * 1024,                         # covers tb=4096 footprint
        ),
        cost_estimate=pl.CostEstimate(flops=flops, transcendentals=0,
                                      bytes_accessed=bytes_accessed),
    )(xp, w1, b1, w2, b2, w3, b3)

    # Un-transpose / un-pad the tiny result slab (a few bytes per row; negligible).
    return out_t[:N_ACTIONS, :B].T


def init_params(key):
    """Deterministic init mimicking nn.Linear default (uniform in +/- 1/sqrt(fan_in))."""
    def linear(k, fan_in, fan_out):
        kw, kb = jax.random.split(k)
        bound = 1.0 / jnp.sqrt(jnp.float32(fan_in))
        w = jax.random.uniform(kw, (fan_in, fan_out), jnp.float32, -bound, bound)  # (in, out)
        b = jax.random.uniform(kb, (1, fan_out), jnp.float32, -bound, bound)
        return w, b

    k1, k2, k3 = jax.random.split(key, 3)
    w1, b1 = linear(k1, N_FEATURES, HIDDEN)
    w2, b2 = linear(k2, HIDDEN, HIDDEN)
    w3, b3 = linear(k3, HIDDEN, N_ACTIONS)
    return {"w1": w1, "b1": b1, "w2": w2, "b2": b2, "w3": w3, "b3": b3}


def reference_forward(x, p):
    # Same bf16-input / f32-accumulate recipe as the kernel, in plain JAX.
    # NOTE: bf16 matmul inputs deviate from the f32 PyTorch Net by ~1e-3 relative on the
    # logits -- fine for argmax action selection.
    xb = x.astype(jnp.bfloat16)
    w1 = p["w1"].astype(jnp.bfloat16)
    w2 = p["w2"].astype(jnp.bfloat16)
    w3 = p["w3"].astype(jnp.bfloat16)
    h1 = jnp.maximum(jnp.dot(xb, w1, preferred_element_type=jnp.float32) + p["b1"], 0.0)
    h2 = jnp.maximum(jnp.dot(h1.astype(jnp.bfloat16), w2,
                             preferred_element_type=jnp.float32) + p["b2"], 0.0)
    return jnp.dot(h2.astype(jnp.bfloat16), w3,
                   preferred_element_type=jnp.float32) + p["b3"]


if __name__ == "__main__":
    key = jax.random.PRNGKey(0)
    kx, kp, kx2, kx3 = jax.random.split(key, 4)
    params = init_params(kp)

    # Small batch (single block).  At B=8 wall time is pure launch overhead -- batch many
    # game states per call in real use.
    B = 8
    x = jax.random.normal(kx, (B, N_FEATURES), jnp.float32)
    out = jax.block_until_ready(net_forward(x, params))
    ref = reference_forward(x, params)
    assert out.shape == (B, N_ACTIONS)
    assert jnp.allclose(out, ref, atol=2e-3, rtol=2e-3)

    # Multi-block grid with a non-multiple batch (exercises padding + pipelined tiles).
    B2 = 160
    x2 = jax.random.normal(kx2, (B2, N_FEATURES), jnp.float32)
    out2 = jax.block_until_ready(net_forward(x2, params, batch_tile=128))
    ref2 = reference_forward(x2, params)
    assert out2.shape == (B2, N_ACTIONS)
    assert jnp.allclose(out2, ref2, atol=2e-3, rtol=2e-3)

    # Exactly-divisible multi-block batch (no padding path, 2 parallel blocks).
    B3 = 512
    x3 = jax.random.normal(kx3, (B3, N_FEATURES), jnp.float32)
    out3 = jax.block_until_ready(net_forward(x3, params, batch_tile=256))
    ref3 = reference_forward(x3, params)
    assert out3.shape == (B3, N_ACTIONS)
    assert jnp.allclose(out3, ref3, atol=2e-3, rtol=2e-3)

    print("KERNEL_OK")
</pallas_src>

<mosaic_0001>
module attributes {stable_mosaic.version = 11 : i64} {
  func.func @mlp_kernel(%arg0: i32, %arg1: memref<128x22xf32, #tpu.memory_space<vmem>>, %arg2: memref<22x128xbf16, #tpu.memory_space<vmem>>, %arg3: memref<1x128xf32, #tpu.memory_space<vmem>>, %arg4: memref<128x128xbf16, #tpu.memory_space<vmem>>, %arg5: memref<1x128xf32, #tpu.memory_space<vmem>>, %arg6: memref<128x8xbf16, #tpu.memory_space<vmem>>, %arg7: memref<1x8xf32, #tpu.memory_space<vmem>>, %arg8: memref<8x128xf32, #tpu.memory_space<vmem>>) attributes {dimension_semantics = [#tpu.dimension_semantics<parallel>], iteration_bounds = array<i64: 1>, scalar_prefetch = 0 : i64, scratch_operands = 0 : i64, tpu.core_type = #tpu.core_type<tc>, window_params = [{transform_indices = @transform_0, window_bounds = array<i64: 128, 22>}, {pipeline_mode = #tpu.pipeline_mode<synchronous>, transform_indices = @transform_1, window_bounds = array<i64: 22, 128>}, {pipeline_mode = #tpu.pipeline_mode<synchronous>, transform_indices = @transform_2, window_bounds = array<i64: 1, 128>}, {pipeline_mode = #tpu.pipeline_mode<synchronous>, transform_indices = @transform_3, window_bounds = array<i64: 128, 128>}, {pipeline_mode = #tpu.pipeline_mode<synchronous>, transform_indices = @transform_4, window_bounds = array<i64: 1, 128>}, {pipeline_mode = #tpu.pipeline_mode<synchronous>, transform_indices = @transform_5, window_bounds = array<i64: 128, 8>}, {pipeline_mode = #tpu.pipeline_mode<synchronous>, transform_indices = @transform_6, window_bounds = array<i64: 1, 8>}, {transform_indices = @transform_7, window_bounds = array<i64: 8, 128>}]} {
    %c0 = arith.constant 0 : index
    %c0_0 = arith.constant 0 : index
    %0 = vector.load %arg1[%c0, %c0_0] : memref<128x22xf32, #tpu.memory_space<vmem>>, vector<128x22xf32>
    %1 = arith.truncf %0 : vector<128x22xf32> to vector<128x22xbf16>
    %c0_1 = arith.constant 0 : index
    %c0_2 = arith.constant 0 : index
    %2 = vector.load %arg2[%c0_1, %c0_2] : memref<22x128xbf16, #tpu.memory_space<vmem>>, vector<22x128xbf16>
    %cst = arith.constant dense<0.000000e+00> : vector<128x128xf32>
    %3 = tpu.matmul %1, %2, %cst {dimension_numbers = #tpu.dot_dimension_numbers<[1], [0], [0], [1], [0, 0, 1, 1], [], []>} : vector<128x22xbf16>, vector<22x128xbf16>, vector<128x128xf32> -> vector<128x128xf32>
    %c0_3 = arith.constant 0 : index
    %c0_4 = arith.constant 0 : index
    %4 = vector.load %arg3[%c0_3, %c0_4] : memref<1x128xf32, #tpu.memory_space<vmem>>, vector<1x128xf32>
    %5 = vector.broadcast %4 : vector<1x128xf32> to vector<128x128xf32>
    %6 = arith.addf %3, %5 : vector<128x128xf32>
    %cst_5 = arith.constant 0.000000e+00 : f32
    %7 = vector.broadcast %cst_5 : f32 to vector<128x128xf32>
    %8 = arith.maximumf %6, %7 : vector<128x128xf32>
    %9 = arith.truncf %8 : vector<128x128xf32> to vector<128x128xbf16>
    %c0_6 = arith.constant 0 : index
    %c0_7 = arith.constant 0 : index
    %10 = vector.load %arg4[%c0_6, %c0_7] : memref<128x128xbf16, #tpu.memory_space<vmem>>, vector<128x128xbf16>
    %cst_8 = arith.constant dense<0.000000e+00> : vector<128x128xf32>
    %11 = tpu.matmul %9, %10, %cst_8 {dimension_numbers = #tpu.dot_dimension_numbers<[1], [0], [0], [1], [0, 0, 1, 1], [], []>} : vector<128x128xbf16>, vector<128x128xbf16>, vector<128x128xf32> -> vector<128x128xf32>
    %c0_9 = arith.constant 0 : index
    %c0_10 = arith.constant 0 : index
    %12 = vector.load %arg5[%c0_9, %c0_10] : memref<1x128xf32, #tpu.memory_space<vmem>>, vector<1x128xf32>
    %13 = vector.broadcast %12 : vector<1x128xf32> to vector<128x128xf32>
    %14 = arith.addf %11, %13 : vector<128x128xf32>
    %cst_11 = arith.constant 0.000000e+00 : f32
    %15 = vector.broadcast %cst_11 : f32 to vector<128x128xf32>
    %16 = arith.maximumf %14, %15 : vector<128x128xf32>
    %17 = arith.truncf %16 : vector<128x128xf32> to vector<128x128xbf16>
    %c0_12 = arith.constant 0 : index
    %c0_13 = arith.constant 0 : index
    %18 = vector.load %arg6[%c0_12, %c0_13] : memref<128x8xbf16, #tpu.memory_space<vmem>>, vector<128x8xbf16>
    %cst_14 = arith.constant dense<0.000000e+00> : vector<128x8xf32>
    %19 = tpu.matmul %17, %18, %cst_14 {dimension_numbers = #tpu.dot_dimension_numbers<[1], [0], [0], [1], [0, 0, 1, 1], [], []>} : vector<128x128xbf16>, vector<128x8xbf16>, vector<128x8xf32> -> vector<128x8xf32>
    %c0_15 = arith.constant 0 : index
    %c0_16 = arith.constant 0 : index
    %20 = vector.load %arg7[%c0_15, %c0_16] : memref<1x8xf32, #tpu.memory_space<vmem>>, vector<1x8xf32>
    %21 = vector.broadcast %20 : vector<1x8xf32> to vector<128x8xf32>
    %22 = arith.addf %19, %21 : vector<128x8xf32>
    %23 = tpu.transpose %22, [1, 0] : vector<128x8xf32> -> vector<8x128xf32>
    %c0_17 = arith.constant 0 : index
    %c0_18 = arith.constant 0 : index
    %24 = vector.load %arg8[%c0_17, %c0_18] : memref<8x128xf32, #tpu.memory_space<vmem>>, vector<8x128xf32>
    tpu.vector_store %arg8[%c0_17, %c0_18], %23 {strides = array<i32>} : memref<8x128xf32, #tpu.memory_space<vmem>>, vector<8x128xf32>,
    return
  }
  func.func @transform_0(%arg0: i32) -> (i32, i32) {
    %c0_i32 = arith.constant 0 : i32
    %c0_i32_0 = arith.constant 0 : i32
    return %arg0, %c0_i32 : i32, i32
  }
  func.func @transform_1(%arg0: i32) -> (i32, i32) {
    %c0_i32 = arith.constant 0 : i32
    %c0_i32_0 = arith.constant 0 : i32
    %c0_i32_1 = arith.constant 0 : i32
    return %c0_i32, %c0_i32_0 : i32, i32
  }
  func.func @transform_2(%arg0: i32) -> (i32, i32) {
    %c0_i32 = arith.constant 0 : i32
    %c0_i32_0 = arith.constant 0 : i32
    %c0_i32_1 = arith.constant 0 : i32
    return %c0_i32, %c0_i32_0 : i32, i32
  }
  func.func @transform_3(%arg0: i32) -> (i32, i32) {
    %c0_i32 = arith.constant 0 : i32
    %c0_i32_0 = arith.constant 0 : i32
    %c0_i32_1 = arith.constant 0 : i32
    return %c0_i32, %c0_i32_0 : i32, i32
  }
  func.func @transform_4(%arg0: i32) -> (i32, i32) {
    %c0_i32 = arith.constant 0 : i32
    %c0_i32_0 = arith.constant 0 : i32
    %c0_i32_1 = arith.constant 0 : i32
    return %c0_i32, %c0_i32_0 : i32, i32
  }
  func.func @transform_5(%arg0: i32) -> (i32, i32) {
    %c0_i32 = arith.constant 0 : i32
    %c0_i32_0 = arith.constant 0 : i32
    %c0_i32_1 = arith.constant 0 : i32
    return %c0_i32, %c0_i32_0 : i32, i32
  }
  func.func @transform_6(%arg0: i32) -> (i32, i32) {
    %c0_i32 = arith.constant 0 : i32
    %c0_i32_0 = arith.constant 0 : i32
    %c0_i32_1 = arith.constant 0 : i32
    return %c0_i32, %c0_i32_0 : i32, i32
  }
  func.func @transform_7(%arg0: i32) -> (i32, i32) {
    %c0_i32 = arith.constant 0 : i32
    %c0_i32_0 = arith.constant 0 : i32
    return %c0_i32, %arg0 : i32, i32
  }
}

</mosaic_0001>

<llo_original>
// kernel: tpu_custom_call.1
$region0: #{tpu_custom_call.1}
  #allocation0 [shape = 'u32[]', space=smem, size = 0x4, offset = 0x4, fixed_abs, tag = 'smem constant byte address 0x4 - core index']
  #allocation1 [shape = 'u32[144,128]{1,0:T(1,128)}', space=vmem, size = 0x12000, scoped, tag = 'internal scratch']
  %s0 = inlined_call_operand.vmem [shape: f32[128,22], index: 0, kind: input, shape index: {}]
  %s1 = inlined_call_operand.vmem [shape: bf16[22,128], index: 1, kind: input, shape index: {}]
  %s2 = inlined_call_operand.vmem [shape: f32[1,128], index: 2, kind: input, shape index: {}]
  %s3 = inlined_call_operand.vmem [shape: bf16[128,128], index: 3, kind: input, shape index: {}]
  %s4 = inlined_call_operand.vmem [shape: f32[1,128], index: 4, kind: input, shape index: {}]
  %s5 = inlined_call_operand.vmem [shape: bf16[128,8], index: 5, kind: input, shape index: {}]
  %s6 = inlined_call_operand.vmem [shape: f32[1,8], index: 6, kind: input, shape index: {}]
  %s7 = inlined_call_operand.hbm [shape: f32[8,128], index: 7, kind: output, shape index: {}]
  %s8 = sld [smem:[#allocation0]]
  $region38: #{tpu_custom_call.1} parent=0
    _
  %s10 = ssub.s32 1, %s8
  %s11 = scalar_select 0, %s10, %s8
  $region1: #{tpu_custom_call.1} parent=0
    #allocation2 [shape = 'u8[4096]{0}', space=vmem, size = 0x1000, scoped, tag = 'output window, operand 0, single buffered']
    #allocation3 [shape = 's32[1]{0}', space=sflag, size = 0x4, scoped, tag = 'scoped memory for tpu_custom_call.1']
    %12 = vsyncpa [#allocation3], 0
    // Predicated region
    $region2: #{tpu_custom_call.1} parent=1 // pred_check
      _
    $region3: #{tpu_custom_call.1} parent=1 // pred_check_branch
      %14 = sbr.rel (0) target = $region5
    $region4: #{tpu_custom_call.1} parent=1 // pred_region
      _
    $region5: #{tpu_custom_call.1} parent=1 // pred_fallthru
      _
    // Predicated region
    $region6: #{tpu_custom_call.1} parent=1 // pred_check
      _
    $region7: #{tpu_custom_call.1} parent=1 // pred_check_branch
      %16 = sbr.rel (0) target = $region9
    $region8: #{tpu_custom_call.1} parent=1 // pred_region
      _
    $region9: #{tpu_custom_call.1} parent=1 // pred_fallthru
      _
    // Predicated region
    $region10: #{tpu_custom_call.1} parent=1 // pred_check
      _
    $region11: #{tpu_custom_call.1} parent=1 // pred_check_branch
      %18 = sbr.rel (0) target = $region13
    $region12: #{tpu_custom_call.1} parent=1 // pred_region
      _
    $region13: #{tpu_custom_call.1} parent=1 // pred_fallthru
      _
    // Predicated region
    $region14: #{tpu_custom_call.1} parent=1 // pred_check
      _
    $region15: #{tpu_custom_call.1} parent=1 // pred_check_branch
      %20 = sbr.rel (0) target = $region17
    $region16: #{tpu_custom_call.1} parent=1 // pred_region
      _
    $region17: #{tpu_custom_call.1} parent=1 // pred_fallthru
      _
    // Predicated region
    $region18: #{tpu_custom_call.1} parent=1 // pred_check
      _
    $region19: #{tpu_custom_call.1} parent=1 // pred_check_branch
      %22 = sbr.rel (0) target = $region21
    $region20: #{tpu_custom_call.1} parent=1 // pred_region
      _
    $region21: #{tpu_custom_call.1} parent=1 // pred_fallthru
      _
    // Predicated region
    $region22: #{tpu_custom_call.1} parent=1 // pred_check
      _
    $region23: #{tpu_custom_call.1} parent=1 // pred_check_branch
      %24 = sbr.rel (0) target = $region25
    $region24: #{tpu_custom_call.1} parent=1 // pred_region
      _
    $region25: #{tpu_custom_call.1} parent=1 // pred_fallthru
      _
    // Predicated region
    $region26: #{tpu_custom_call.1} parent=1 // pred_check
      _
    $region27: #{tpu_custom_call.1} parent=1 // pred_check_branch
      %26 = sbr.rel (0) target = $region29
    $region28: #{tpu_custom_call.1} parent=1 // pred_region
      _
    $region29: #{tpu_custom_call.1} parent=1 // pred_fallthru
      _
    %v28 = vld [vmem:[%s0] sm:$0xff]
    %v29 = vld [vmem:[%s0 + $0x8] sm:$0xff]
    %v30 = vld [vmem:[%s0 + $0x10] sm:$0xff]
    %v31 = vld [vmem:[%s0 + $0x18] sm:$0xff]
    %v32 = vld [vmem:[%s0 + $0x20] sm:$0xff]
    %v33 = vld [vmem:[%s0 + $0x28] sm:$0xff]
    %v34 = vld [vmem:[%s0 + $0x30] sm:$0xff]
    %v35 = vld [vmem:[%s0 + $0x38] sm:$0xff]
    %v36 = vld [vmem:[%s0 + $0x40] sm:$0xff]
    %v37 = vld [vmem:[%s0 + $0x48] sm:$0xff]
    %v38 = vld [vmem:[%s0 + $0x50] sm:$0xff]
    %v39 = vld [vmem:[%s0 + $0x58] sm:$0xff]
    %v40 = vld [vmem:[%s0 + $0x60] sm:$0xff]
    %v41 = vld [vmem:[%s0 + $0x68] sm:$0xff]
    %v42 = vld [vmem:[%s0 + $0x70] sm:$0xff]
    %v43 = vld [vmem:[%s0 + $0x78] sm:$0xff]
    %v44 = vpack.c.bf16 %v29, %v28
    %v45 = vpack.c.bf16 %v31, %v30
    %v46 = vpack.c.bf16 %v33, %v32
    %v47 = vpack.c.bf16 %v35, %v34
    %v48 = vpack.c.bf16 %v37, %v36
    %v49 = vpack.c.bf16 %v39, %v38
    %v50 = vpack.c.bf16 %v41, %v40
    %v51 = vpack.c.bf16 %v43, %v42
    %v52 = vld [vmem:[%s1] sm:$0xf]
    %v53 = vld [vmem:[%s1 + $0x4] sm:$0xf]
    %v54 = vld [vmem:[%s1 + $0x8] sm:$0x7]
    %v55 = vld [vmem:[%s2] sm:$0x1]
    %v57 = vlaneseq
    %v58 = vshrl.u32 %v57, 7
    %v59 = vsub.s32 0, %v58
    %v60 = vrot.slane %v55, %v59
    %v65 = vunpack.c.l.b16 %v52
    %v66 = vunpack.c.l.b16 %v53
    %v67 = vunpack.c.l.b16 %v54
    %v68 = vpack.c.b16 %v66, %v65
    %v69 = vpack.c.b16 %v67, %v67
    %vm71 = vcmask 179200
    %v73 = vsel %vm71, %v44, 0
    %v76 = vsel %vm71, %v45, 0
    %v79 = vsel %vm71, %v46, 0
    %v82 = vsel %vm71, %v47, 0
    %v85 = vsel %vm71, %v48, 0
    %v88 = vsel %vm71, %v49, 0
    %v91 = vsel %vm71, %v50, 0
    %v94 = vsel %vm71, %v51, 0
    %vm96 = vcmask 1042432
    %v98 = vsel %vm96, %v69, 0
    %100 = vmatprep.subr.bf16.mxu0 0
    %101 = vmatpush1.bf16.msra.mxu0 %v68
    %102 = vmatprep.subr.bf16.mxu0 0
    %103 = vmatpush1.bf16.msra.mxu0 %v98
    %104 = vmatprep.subr.bf16.mxu0 0
    %105 = vmatpush1.bf16.msra.mxu0 0
    %106 = vmatprep.subr.bf16.mxu0 0
    %107 = vmatpush1.bf16.msra.mxu0 0
    %108 = vmatprep.subr.bf16.mxu0 0
    %109 = vmatpush1.bf16.msra.mxu0 0
    %110 = vmatprep.subr.bf16.mxu0 0
    %111 = vmatpush1.bf16.msra.mxu0 0
    %112 = vmatprep.subr.bf16.mxu0 0
    %113 = vmatpush1.bf16.msra.mxu0 0
    %114 = vmatprep.subr.bf16.mxu0 0
    %115 = vmatpush1.bf16.msra.mxu0 0
    %116 = vmatprep.subr.bf16.mxu0 0
    %117 = vmatpush1.bf16.msra.mxu0 0
    %118 = vmatprep.subr.bf16.mxu0 0
    %119 = vmatpush1.bf16.msra.mxu0 0
    %120 = vmatprep.subr.bf16.mxu0 0
    %121 = vmatpush1.bf16.msra.mxu0 0
    %122 = vmatprep.subr.bf16.mxu0 0
    %123 = vmatpush1.bf16.msra.mxu0 0
    %124 = vmatprep.subr.bf16.mxu0 0
    %125 = vmatpush1.bf16.msra.mxu0 0
    %126 = vmatprep.subr.bf16.mxu0 0
    %127 = vmatpush1.bf16.msra.mxu0 0
    %128 = vmatprep.subr.bf16.mxu0 0
    %129 = vmatpush1.bf16.msra.mxu0 0
    %130 = vmatprep.subr.bf16.mxu0 0
    %131 = vmatpush1.bf16.msra.mxu0 0
    %132 = vmatprep.mubr.bf16.mxu0 0
    %133 = vmatmul.mubr.bf16.gmra.mrb[0].mxu0 %v73
    %v134 = vpop.f32.mrb[0].mxu0
    %v135 = vadd.f32 %v60, %v134
    %v136 = vpop.f32.mrb[0].mxu0
    %v137 = vpop.f32.mrb[0].mxu0
    %v138 = vadd.f32 %v60, %v137
    %v139 = vpop.f32.mrb[0].mxu0
    %140 = vmatprep.mubr.bf16.mxu0 0
    %141 = vmatmul.mubr.bf16.gmra.mrb[0].mxu0 %v76
    %v142 = vpop.f32.mrb[0].mxu0
    %v143 = vadd.f32 %v60, %v142
    %v144 = vpop.f32.mrb[0].mxu0
    %v145 = vpop.f32.mrb[0].mxu0
    %v146 = vadd.f32 %v60, %v145
    %v147 = vpop.f32.mrb[0].mxu0
    %148 = vmatprep.mubr.bf16.mxu0 0
    %149 = vmatmul.mubr.bf16.gmra.mrb[0].mxu0 %v79
    %v150 = vpop.f32.mrb[0].mxu0
    %v151 = vadd.f32 %v60, %v150
    %v152 = vpop.f32.mrb[0].mxu0
    %v153 = vpop.f32.mrb[0].mxu0
    %v154 = vadd.f32 %v60, %v153
    %v155 = vpop.f32.mrb[0].mxu0
    %156 = vmatprep.mubr.bf16.mxu0 0
    %157 = vmatmul.mubr.bf16.gmra.mrb[0].mxu0 %v82
    %v158 = vpop.f32.mrb[0].mxu0
    %v159 = vadd.f32 %v60, %v158
    %v160 = vpop.f32.mrb[0].mxu0
    %v161 = vpop.f32.mrb[0].mxu0
    %v162 = vadd.f32 %v60, %v161
    %v163 = vpop.f32.mrb[0].mxu0
    %164 = vmatprep.mubr.bf16.mxu0 0
    %165 = vmatmul.mubr.bf16.gmra.mrb[0].mxu0 %v85
    %v166 = vpop.f32.mrb[0].mxu0
    %v167 = vadd.f32 %v60, %v166
    %v168 = vpop.f32.mrb[0].mxu0
    %v169 = vpop.f32.mrb[0].mxu0
    %v170 = vadd.f32 %v60, %v169
    %v171 = vpop.f32.mrb[0].mxu0
    %172 = vmatprep.mubr.bf16.mxu0 0
    %173 = vmatmul.mubr.bf16.gmra.mrb[0].mxu0 %v88
    %v174 = vpop.f32.mrb[0].mxu0
    %v175 = vadd.f32 %v60, %v174
    %v176 = vpop.f32.mrb[0].mxu0
    %v177 = vpop.f32.mrb[0].mxu0
    %v178 = vadd.f32 %v60, %v177
    %v179 = vpop.f32.mrb[0].mxu0
    %180 = vmatprep.mubr.bf16.mxu0 0
    %181 = vmatmul.mubr.bf16.gmra.mrb[0].mxu0 %v91
    %v182 = vpop.f32.mrb[0].mxu0
    %v183 = vadd.f32 %v60, %v182
    %v184 = vpop.f32.mrb[0].mxu0
    %v185 = vpop.f32.mrb[0].mxu0
    %v186 = vadd.f32 %v60, %v185
    %v187 = vpop.f32.mrb[0].mxu0
    %188 = vmatprep.mubr.bf16.mxu0 0
    %189 = vmatmul.mubr.bf16.gmra.mrb[0].mxu0 %v94
    %v190 = vpop.f32.mrb[0].mxu0
    %v191 = vadd.f32 %v60, %v190
    %v192 = vpop.f32.mrb[0].mxu0
    %v193 = vpop.f32.mrb[0].mxu0
    %v194 = vadd.f32 %v60, %v193
    %v195 = vpop.f32.mrb[0].mxu0
    %196 = vdwg.mxu0
    %v197 = vmax.f32 %v135, 0.0
    %v198 = vmax.f32 %v138, 0.0
    %v199 = vmax.f32 %v143, 0.0
    %v200 = vmax.f32 %v146, 0.0
    %v201 = vmax.f32 %v151, 0.0
    %v202 = vmax.f32 %v154, 0.0
    %v203 = vmax.f32 %v159, 0.0
    %v204 = vmax.f32 %v162, 0.0
    %v205 = vmax.f32 %v167, 0.0
    %v206 = vmax.f32 %v170, 0.0
    %v207 = vmax.f32 %v175, 0.0
    %v208 = vmax.f32 %v178, 0.0
    %v209 = vmax.f32 %v183, 0.0
    %v210 = vmax.f32 %v186, 0.0
    %v211 = vmax.f32 %v191, 0.0
    %v212 = vmax.f32 %v194, 0.0
    %v213 = vpack.c.bf16 %v198, %v197
    %v214 = vpack.c.bf16 %v200, %v199
    %v215 = vpack.c.bf16 %v202, %v201
    %v216 = vpack.c.bf16 %v204, %v203
    %v217 = vpack.c.bf16 %v206, %v205
    %v218 = vpack.c.bf16 %v208, %v207
    %v219 = vpack.c.bf16 %v210, %v209
    %v220 = vpack.c.bf16 %v212, %v211
    %v221 = vld [vmem:[%s3] sm:$0xf]
    %v222 = vld [vmem:[%s3 + $0x4] sm:$0xf]
    %v223 = vld [vmem:[%s3 + $0x8] sm:$0xf]
    %v224 = vld [vmem:[%s3 + $0xc] sm:$0xf]
    %v225 = vld [vmem:[%s3 + $0x10] sm:$0xf]
    %v226 = vld [vmem:[%s3 + $0x14] sm:$0xf]
    %v227 = vld [vmem:[%s3 + $0x18] sm:$0xf]
    %v228 = vld [vmem:[%s3 + $0x1c] sm:$0xf]
    %v229 = vld [vmem:[%s3 + $0x20] sm:$0xf]
    %v230 = vld [vmem:[%s3 + $0x24] sm:$0xf]
    %v231 = vld [vmem:[%s3 + $0x28] sm:$0xf]
    %v232 = vld [vmem:[%s3 + $0x2c] sm:$0xf]
    %v233 = vld [vmem:[%s3 + $0x30] sm:$0xf]
    %v234 = vld [vmem:[%s3 + $0x34] sm:$0xf]
    %v235 = vld [vmem:[%s3 + $0x38] sm:$0xf]
    %v236 = vld [vmem:[%s3 + $0x3c] sm:$0xf]
    %v237 = vld [vmem:[%s4] sm:$0x1]
    %v239 = vlaneseq
    %v240 = vshrl.u32 %v239, 7
    %v241 = vsub.s32 0, %v240
    %v242 = vrot.slane %v237, %v241
    %v260 = vunpack.c.l.b16 %v221
    %v261 = vunpack.c.l.b16 %v222
    %v262 = vunpack.c.l.b16 %v223
    %v263 = vunpack.c.l.b16 %v224
    %v264 = vunpack.c.l.b16 %v225
    %v265 = vunpack.c.l.b16 %v226
    %v266 = vunpack.c.l.b16 %v227
    %v267 = vunpack.c.l.b16 %v228
    %v268 = vunpack.c.l.b16 %v229
    %v269 = vunpack.c.l.b16 %v230
    %v270 = vunpack.c.l.b16 %v231
    %v271 = vunpack.c.l.b16 %v232
    %v272 = vunpack.c.l.b16 %v233
    %v273 = vunpack.c.l.b16 %v234
    %v274 = vunpack.c.l.b16 %v235
    %v275 = vunpack.c.l.b16 %v236
    %v276 = vpack.c.b16 %v261, %v260
    %v277 = vpack.c.b16 %v263, %v262
    %v278 = vpack.c.b16 %v265, %v264
    %v279 = vpack.c.b16 %v267, %v266
    %v280 = vpack.c.b16 %v269, %v268
    %v281 = vpack.c.b16 %v271, %v270
    %v282 = vpack.c.b16 %v273, %v272
    %v283 = vpack.c.b16 %v275, %v274
    %292 = vmatprep.subr.bf16.mxu0 0
    %293 = vmatpush1.bf16.msra.mxu0 %v276
    %294 = vmatprep.subr.bf16.mxu0 0
    %295 = vmatpush1.bf16.msra.mxu0 %v277
    %296 = vmatprep.subr.bf16.mxu0 0
    %297 = vmatpush1.bf16.msra.mxu0 %v278
    %298 = vmatprep.subr.bf16.mxu0 0
    %299 = vmatpush1.bf16.msra.mxu0 %v279
    %300 = vmatprep.subr.bf16.mxu0 0
    %301 = vmatpush1.bf16.msra.mxu0 %v280
    %302 = vmatprep.subr.bf16.mxu0 0
    %303 = vmatpush1.bf16.msra.mxu0 %v281
    %304 = vmatprep.subr.bf16.mxu0 0
    %305 = vmatpush1.bf16.msra.mxu0 %v282
    %306 = vmatprep.subr.bf16.mxu0 0
    %307 = vmatpush1.bf16.msra.mxu0 %v283
    %308 = vmatprep.subr.bf16.mxu0 0
    %309 = vmatpush1.bf16.msra.mxu0 0
    %310 = vmatprep.subr.bf16.mxu0 0
    %311 = vmatpush1.bf16.msra.mxu0 0
    %312 = vmatprep.subr.bf16.mxu0 0
    %313 = vmatpush1.bf16.msra.mxu0 0
    %314 = vmatprep.subr.bf16.mxu0 0
    %315 = vmatpush1.bf16.msra.mxu0 0
    %316 = vmatprep.subr.bf16.mxu0 0
    %317 = vmatpush1.bf16.msra.mxu0 0
    %318 = vmatprep.subr.bf16.mxu0 0
    %319 = vmatpush1.bf16.msra.mxu0 0
    %320 = vmatprep.subr.bf16.mxu0 0
    %321 = vmatpush1.bf16.msra.mxu0 0
    %322 = vmatprep.subr.bf16.mxu0 0
    %323 = vmatpush1.bf16.msra.mxu0 0
    %324 = vmatprep.mubr.bf16.mxu0 0
    %325 = vmatmul.mubr.bf16.gmra.mrb[0].mxu0 %v213
    %v326 = vpop.f32.mrb[0].mxu0
    %v327 = vadd.f32 %v242, %v326
    %v328 = vpop.f32.mrb[0].mxu0
    %v329 = vpop.f32.mrb[0].mxu0
    %v330 = vadd.f32 %v242, %v329
    %v331 = vpop.f32.mrb[0].mxu0
    %332 = vmatprep.mubr.bf16.mxu0 0
    %333 = vmatmul.mubr.bf16.gmra.mrb[0].mxu0 %v214
    %v334 = vpop.f32.mrb[0].mxu0
    %v335 = vadd.f32 %v242, %v334
    %v336 = vpop.f32.mrb[0].mxu0
    %v337 = vpop.f32.mrb[0].mxu0
    %v338 = vadd.f32 %v242, %v337
    %v339 = vpop.f32.mrb[0].mxu0
    %340 = vmatprep.mubr.bf16.mxu0 0
    %341 = vmatmul.mubr.bf16.gmra.mrb[0].mxu0 %v215
    %v342 = vpop.f32.mrb[0].mxu0
    %v343 = vadd.f32 %v242, %v342
    %v344 = vpop.f32.mrb[0].mxu0
    %v345 = vpop.f32.mrb[0].mxu0
    %v346 = vadd.f32 %v242, %v345
    %v347 = vpop.f32.mrb[0].mxu0
    %348 = vmatprep.mubr.bf16.mxu0 0
    %349 = vmatmul.mubr.bf16.gmra.mrb[0].mxu0 %v216
    %v350 = vpop.f32.mrb[0].mxu0
    %v351 = vadd.f32 %v242, %v350
    %v352 = vpop.f32.mrb[0].mxu0
    %v353 = vpop.f32.mrb[0].mxu0
    %v354 = vadd.f32 %v242, %v353
    %v355 = vpop.f32.mrb[0].mxu0
    %356 = vmatprep.mubr.bf16.mxu0 0
    %357 = vmatmul.mubr.bf16.gmra.mrb[0].mxu0 %v217
    %v358 = vpop.f32.mrb[0].mxu0
    %v359 = vadd.f32 %v242, %v358
    %v360 = vpop.f32.mrb[0].mxu0
    %v361 = vpop.f32.mrb[0].mxu0
    %v362 = vadd.f32 %v242, %v361
    %v363 = vpop.f32.mrb[0].mxu0
    %364 = vmatprep.mubr.bf16.mxu0 0
    %365 = vmatmul.mubr.bf16.gmra.mrb[0].mxu0 %v218
    %v366 = vpop.f32.mrb[0].mxu0
    %v367 = vadd.f32 %v242, %v366
    %v368 = vpop.f32.mrb[0].mxu0
    %v369 = vpop.f32.mrb[0].mxu0
    %v370 = vadd.f32 %v242, %v369
    %v371 = vpop.f32.mrb[0].mxu0
    %372 = vmatprep.mubr.bf16.mxu0 0
    %373 = vmatmul.mubr.bf16.gmra.mrb[0].mxu0 %v219
    %v374 = vpop.f32.mrb[0].mxu0
    %v375 = vadd.f32 %v242, %v374
    %v376 = vpop.f32.mrb[0].mxu0
    %v377 = vpop.f32.mrb[0].mxu0
    %v378 = vadd.f32 %v242, %v377
    %v379 = vpop.f32.mrb[0].mxu0
    %380 = vmatprep.mubr.bf16.mxu0 0
    %381 = vmatmul.mubr.bf16.gmra.mrb[0].mxu0 %v220
    %v382 = vpop.f32.mrb[0].mxu0
    %v383 = vadd.f32 %v242, %v382
    %v384 = vpop.f32.mrb[0].mxu0
    %v385 = vpop.f32.mrb[0].mxu0
    %v386 = vadd.f32 %v242, %v385
    %v387 = vpop.f32.mrb[0].mxu0
    %388 = vdwg.mxu0
    %v389 = vmax.f32 %v327, 0.0
    %v390 = vmax.f32 %v330, 0.0
    %v391 = vmax.f32 %v335, 0.0
    %v392 = vmax.f32 %v338, 0.0
    %v393 = vmax.f32 %v343, 0.0
    %v394 = vmax.f32 %v346, 0.0
    %v395 = vmax.f32 %v351, 0.0
    %v396 = vmax.f32 %v354, 0.0
    %v397 = vmax.f32 %v359, 0.0
    %v398 = vmax.f32 %v362, 0.0
    %v399 = vmax.f32 %v367, 0.0
    %v400 = vmax.f32 %v370, 0.0
    %v401 = vmax.f32 %v375, 0.0
    %v402 = vmax.f32 %v378, 0.0
    %v403 = vmax.f32 %v383, 0.0
    %v404 = vmax.f32 %v386, 0.0
    %v405 = vpack.c.bf16 %v390, %v389
    %v406 = vpack.c.bf16 %v392, %v391
    %v407 = vpack.c.bf16 %v394, %v393
    %v408 = vpack.c.bf16 %v396, %v395
    %v409 = vpack.c.bf16 %v398, %v397
    %v410 = vpack.c.bf16 %v400, %v399
    %v411 = vpack.c.bf16 %v402, %v401
    %v412 = vpack.c.bf16 %v404, %v403
    %v413 = vld [vmem:[%s5] sm:$0xf]
    %v414 = vld [vmem:[%s5 + $0x4] sm:$0xf]
    %v415 = vld [vmem:[%s5 + $0x8] sm:$0xf]
    %v416 = vld [vmem:[%s5 + $0xc] sm:$0xf]
    %v417 = vld [vmem:[%s5 + $0x10] sm:$0xf]
    %v418 = vld [vmem:[%s5 + $0x14] sm:$0xf]
    %v419 = vld [vmem:[%s5 + $0x18] sm:$0xf]
    %v420 = vld [vmem:[%s5 + $0x1c] sm:$0xf]
    %v421 = vld [vmem:[%s5 + $0x20] sm:$0xf]
    %v422 = vld [vmem:[%s5 + $0x24] sm:$0xf]
    %v423 = vld [vmem:[%s5 + $0x28] sm:$0xf]
    %v424 = vld [vmem:[%s5 + $0x2c] sm:$0xf]
    %v425 = vld [vmem:[%s5 + $0x30] sm:$0xf]
    %v426 = vld [vmem:[%s5 + $0x34] sm:$0xf]
    %v427 = vld [vmem:[%s5 + $0x38] sm:$0xf]
    %v428 = vld [vmem:[%s5 + $0x3c] sm:$0xf]
    %v429 = vld [vmem:[%s6] sm:$0x1]
    %v431 = vlaneseq
    %v432 = vshrl.u32 %v431, 7
    %v433 = vsub.s32 0, %v432
    %v434 = vrot.slane %v429, %v433
    %v452 = vunpack.c.l.b16 %v413
    %v453 = vunpack.c.l.b16 %v414
    %v454 = vunpack.c.l.b16 %v415
    %v455 = vunpack.c.l.b16 %v416
    %v456 = vunpack.c.l.b16 %v417
    %v457 = vunpack.c.l.b16 %v418
    %v458 = vunpack.c.l.b16 %v419
    %v459 = vunpack.c.l.b16 %v420
    %v460 = vunpack.c.l.b16 %v421
    %v461 = vunpack.c.l.b16 %v422
    %v462 = vunpack.c.l.b16 %v423
    %v463 = vunpack.c.l.b16 %v424
    %v464 = vunpack.c.l.b16 %v425
    %v465 = vunpack.c.l.b16 %v426
    %v466 = vunpack.c.l.b16 %v427
    %v467 = vunpack.c.l.b16 %v428
    %v468 = vpack.c.b16 %v453, %v452
    %v469 = vpack.c.b16 %v455, %v454
    %v470 = vpack.c.b16 %v457, %v456
    %v471 = vpack.c.b16 %v459, %v458
    %v472 = vpack.c.b16 %v461, %v460
    %v473 = vpack.c.b16 %v463, %v462
    %v474 = vpack.c.b16 %v465, %v464
    %v475 = vpack.c.b16 %v467, %v466
    %484 = vmatprep.subr.bf16.mxu0 0
    %485 = vmatpush1.bf16.msra.mxu0 %v468
    %486 = vmatprep.subr.bf16.mxu0 0
    %487 = vmatpush1.bf16.msra.mxu0 %v469
    %488 = vmatprep.subr.bf16.mxu0 0
    %489 = vmatpush1.bf16.msra.mxu0 %v470
    %490 = vmatprep.subr.bf16.mxu0 0
    %491 = vmatpush1.bf16.msra.mxu0 %v471
    %492 = vmatprep.subr.bf16.mxu0 0
    %493 = vmatpush1.bf16.msra.mxu0 %v472
    %494 = vmatprep.subr.bf16.mxu0 0
    %495 = vmatpush1.bf16.msra.mxu0 %v473
    %496 = vmatprep.subr.bf16.mxu0 0
    %497 = vmatpush1.bf16.msra.mxu0 %v474
    %498 = vmatprep.subr.bf16.mxu0 0
    %499 = vmatpush1.bf16.msra.mxu0 %v475
    %500 = vmatprep.subr.bf16.mxu0 0
    %501 = vmatpush1.bf16.msra.mxu0 0
    %502 = vmatprep.subr.bf16.mxu0 0
    %503 = vmatpush1.bf16.msra.mxu0 0
    %504 = vmatprep.subr.bf16.mxu0 0
    %505 = vmatpush1.bf16.msra.mxu0 0
    %506 = vmatprep.subr.bf16.mxu0 0
    %507 = vmatpush1.bf16.msra.mxu0 0
    %508 = vmatprep.subr.bf16.mxu0 0
    %509 = vmatpush1.bf16.msra.mxu0 0
    %510 = vmatprep.subr.bf16.mxu0 0
    %511 = vmatpush1.bf16.msra.mxu0 0
    %512 = vmatprep.subr.bf16.mxu0 0
    %513 = vmatpush1.bf16.msra.mxu0 0
    %514 = vmatprep.subr.bf16.mxu0 0
    %515 = vmatpush1.bf16.msra.mxu0 0
    %516 = vmatprep.mubr.bf16.mxu0 0
    %517 = vmatmul.mubr.bf16.gmra.mrb[0].mxu0 %v405
    %v518 = vpop.f32.mrb[0].mxu0
    %v519 = vadd.f32 %v434, %v518
    %v520 = vpop.f32.mrb[0].mxu0
    %v521 = vpop.f32.mrb[0].mxu0
    %v522 = vadd.f32 %v434, %v521
    %v523 = vpop.f32.mrb[0].mxu0
    %524 = vmatprep.mubr.bf16.mxu0 0
    %525 = vmatmul.mubr.bf16.gmra.mrb[0].mxu0 %v406
    %v526 = vpop.f32.mrb[0].mxu0
    %v527 = vadd.f32 %v434, %v526
    %v528 = vpop.f32.mrb[0].mxu0
    %v529 = vpop.f32.mrb[0].mxu0
    %v530 = vadd.f32 %v434, %v529
    %v531 = vpop.f32.mrb[0].mxu0
    %532 = vmatprep.mubr.bf16.mxu0 0
    %533 = vmatmul.mubr.bf16.gmra.mrb[0].mxu0 %v407
    %v534 = vpop.f32.mrb[0].mxu0
    %v535 = vadd.f32 %v434, %v534
    %v536 = vpop.f32.mrb[0].mxu0
    %v537 = vpop.f32.mrb[0].mxu0
    %v538 = vadd.f32 %v434, %v537
    %v539 = vpop.f32.mrb[0].mxu0
    %540 = vmatprep.mubr.bf16.mxu0 0
    %541 = vmatmul.mubr.bf16.gmra.mrb[0].mxu0 %v408
    %v542 = vpop.f32.mrb[0].mxu0
    %v543 = vadd.f32 %v434, %v542
    %v544 = vpop.f32.mrb[0].mxu0
    %v545 = vpop.f32.mrb[0].mxu0
    %v546 = vadd.f32 %v434, %v545
    %v547 = vpop.f32.mrb[0].mxu0
    %548 = vmatprep.mubr.bf16.mxu0 0
    %549 = vmatmul.mubr.bf16.gmra.mrb[0].mxu0 %v409
    %v550 = vpop.f32.mrb[0].mxu0
    %v551 = vadd.f32 %v434, %v550
    %v552 = vpop.f32.mrb[0].mxu0
    %v553 = vpop.f32.mrb[0].mxu0
    %v554 = vadd.f32 %v434, %v553
    %v555 = vpop.f32.mrb[0].mxu0
    %556 = vmatprep.mubr.bf16.mxu0 0
    %557 = vmatmul.mubr.bf16.gmra.mrb[0].mxu0 %v410
    %v558 = vpop.f32.mrb[0].mxu0
    %v559 = vadd.f32 %v434, %v558
    %v560 = vpop.f32.mrb[0].mxu0
    %v561 = vpop.f32.mrb[0].mxu0
    %v562 = vadd.f32 %v434, %v561
    %v563 = vpop.f32.mrb[0].mxu0
    %564 = vmatprep.mubr.bf16.mxu0 0
    %565 = vmatmul.mubr.bf16.gmra.mrb[0].mxu0 %v411
    %v566 = vpop.f32.mrb[0].mxu0
    %v567 = vadd.f32 %v434, %v566
    %v568 = vpop.f32.mrb[0].mxu0
    %v569 = vpop.f32.mrb[0].mxu0
    %v570 = vadd.f32 %v434, %v569
    %v571 = vpop.f32.mrb[0].mxu0
    %572 = vmatprep.mubr.bf16.mxu0 0
    %573 = vmatmul.mubr.bf16.gmra.mrb[0].mxu0 %v412
    %v574 = vpop.f32.mrb[0].mxu0
    %v575 = vadd.f32 %v434, %v574
    %v576 = vpop.f32.mrb[0].mxu0
    %v577 = vpop.f32.mrb[0].mxu0
    %v578 = vadd.f32 %v434, %v577
    %v579 = vpop.f32.mrb[0].mxu0
    %580 = vdwg.mxu0
    %581 = vxpose.xlu0.b32.start [1/16] %v519, 128
    %582 = vxpose.xlu0.b32.cont [2/16] %v522, 128
    %583 = vxpose.xlu0.b32.cont [3/16] %v527, 128
    %584 = vxpose.xlu0.b32.cont [4/16] %v530, 128
    %585 = vxpose.xlu0.b32.cont [5/16] %v535, 128
    %586 = vxpose.xlu0.b32.cont [6/16] %v538, 128
    %587 = vxpose.xlu0.b32.cont [7/16] %v543, 128
    %588 = vxpose.xlu0.b32.cont [8/16] %v546, 128
    %589 = vxpose.xlu0.b32.cont [9/16] %v551, 128
    %590 = vxpose.xlu0.b32.cont [10/16] %v554, 128
    %591 = vxpose.xlu0.b32.cont [11/16] %v559, 128
    %592 = vxpose.xlu0.b32.cont [12/16] %v562, 128
    %593 = vxpose.xlu0.b32.cont [13/16] %v567, 128
    %594 = vxpose.xlu0.b32.cont [14/16] %v570, 128
    %595 = vxpose.xlu0.b32.cont [15/16] %v575, 128
    %596 = vxpose.xlu0.b32.end [16/16] %v578, 128
    %v597 = vpop.trf.xlu0
    %v598 = vpop.trf.xlu0
    %v599 = vpop.trf.xlu0
    %v600 = vpop.trf.xlu0
    %v601 = vpop.trf.xlu0
    %v602 = vpop.trf.xlu0
    %v603 = vpop.trf.xlu0
    %v604 = vpop.trf.xlu0
    %v605 = vpop.trf.xlu0
    %v606 = vpop.trf.xlu0
    %v607 = vpop.trf.xlu0
    %v608 = vpop.trf.xlu0
    %v609 = vpop.trf.xlu0
    %v610 = vpop.trf.xlu0
    %v611 = vpop.trf.xlu0
    %v612 = vpop.trf.xlu0
    %613 = vst [vmem:[#allocation2] sm:$0xff] %v597
    // Predicated region
    $region30: #{tpu_custom_call.1} parent=1 // pred_check
      _
    $region31: #{tpu_custom_call.1} parent=1 // pred_check_branch
      %615 = sbr.rel (0) target = $region33
    $region32: #{tpu_custom_call.1} parent=1 // pred_region
      %s617 = ssub.s32 128, 128
      %618 = vsyncadd [#allocation3], %s617
      %s620 = sshll.u32 [#allocation2], 4
      %s621 = int_to_ptr.vmem [resolvable:$true] %s620
      %623 = dma.vmem_to_hbm [thread:$0]  %s621, 128, %s7, [#allocation3]
    $region33: #{tpu_custom_call.1} parent=1 // pred_fallthru
      _
    // Predicated region
    $region34: #{tpu_custom_call.1} parent=1 // pred_check
      _
    $region35: #{tpu_custom_call.1} parent=1 // pred_check_branch
      %625 = sbr.rel (0) target = $region37
    $region36: #{tpu_custom_call.1} parent=1 // pred_region
      %626 = dma.done [#allocation3], 128
    $region37: #{tpu_custom_call.1} parent=1 // pred_fallthru
      _
    %627 = vsyncpa [#allocation3], 1

</llo_original>
